<compile_context>
chip_gen: v7x
topology: tpu7x:2x2x1
jax: 0.10.0
libtpu: 0.0.40
codegen_flags: <defaults>
</compile_context>

<pallas_src>
import functools

import jax
import jax.numpy as jnp
from jax.experimental import pallas as pl
from jax.experimental.pallas import tpu as pltpu


def _round_up(x, m):
    return (x + m - 1) // m * m


@functools.lru_cache(maxsize=1)
def _is_v5e():
    try:
        kind = jax.devices()[0].device_kind.lower()
        return ("v5 lite" in kind) or ("v5e" in kind) or ("v5litepod" in kind)
    except Exception:
        return False


@functools.lru_cache(maxsize=1)
def _vmem_budget():
    """Physical per-core VMEM * 0.70 (leaves headroom for Mosaic scratch)."""
    phys = 64 << 20  # conservative default = v7x per-TensorCore VMEM
    try:
        info = pltpu.get_tpu_info()
        phys = int(getattr(info, "vmem_capacity_bytes", phys))
    except Exception:
        pass
    return max(int(phys * 0.70), 32 << 20)


@functools.lru_cache(maxsize=1)
def _weight_pipeline_supported():
    """Check (at spec-construction time) that pipeline_mode=pl.Buffered works."""
    try:
        pl.BlockSpec((8, 128), lambda i, j: (0, j), pipeline_mode=pl.Buffered(3))
        return True
    except Exception:
        return False


def _pick_tn(np_):
    base = 128 if _is_v5e() else 256   # v6e/v7x MXU is 256-wide; v5e is 128
    return base if np_ % base == 0 else 128


# --------------------------------------------------------------------------
# Pallas kernels
# --------------------------------------------------------------------------

def _mm_bias_kernel(a_ref, b_ref, bias_ref, o_ref, *, relu):
    """bf16 matmul (f32 accumulate) + f32 bias + optional ReLU."""
    acc = jnp.dot(a_ref[...], b_ref[...], preferred_element_type=jnp.float32)
    r = acc + bias_ref[...]
    if relu:
        r = jnp.maximum(r, 0.0)
    o_ref[...] = r.astype(o_ref.dtype)


def _mm_bias_res_kernel(a_ref, b_ref, bias_ref, res_ref, o_ref, *, relu):
    """Same as above with the residual add fused into the epilogue."""
    acc = jnp.dot(a_ref[...], b_ref[...], preferred_element_type=jnp.float32)
    r = acc + bias_ref[...] + res_ref[...].astype(jnp.float32)
    if relu:
        r = jnp.maximum(r, 0.0)
    o_ref[...] = r.astype(o_ref.dtype)


def _max9_kernel(x_ref, o_ref):
    m = x_ref[0]
    for t in range(1, 9):
        m = jnp.maximum(m, x_ref[t])
    o_ref[...] = m


def _head_kernel(x_ref, w_ref, b_ref, o_ref):
    """Fused global-avgpool + Linear classifier head."""
    feats = jnp.mean(x_ref[...].astype(jnp.float32), axis=1)      # (bn, C)
    logits = jnp.dot(feats.astype(jnp.bfloat16), w_ref[...],
                     preferred_element_type=jnp.float32) + b_ref[...]
    o_ref[...] = logits


# --------------------------------------------------------------------------
# Matmul wrapper (fused conv-as-matmul + bias + residual + ReLU)
# --------------------------------------------------------------------------

def _working_set(tm, Kp, tn, out_isz, has_res, wbuf):
    ws = 2 * (tm * Kp * 2 + tm * tn * out_isz) + wbuf * Kp * tn * 2 + 2 * tn * 4
    if has_res:
        ws += 2 * tm * tn * 2
    return ws


def _pick_tm(M, Kp, tn, out_isz, has_res, wbuf, budget):
    if M >= 512:
        tm = 512
    elif M >= 256:
        tm = 256
    else:
        return _round_up(M, 16)
    while tm > 128 and _working_set(tm, Kp, tn, out_isz, has_res, wbuf) \
            + (8 << 20) > budget:
        tm //= 2
    return tm


def _matmul_bias(a, w, bias, *, relu, residual=None, out_dtype=jnp.bfloat16):
    """a:(M,K) bf16 @ w:(Kp,Np) bf16 (pre-padded) + bias:(1,Np) f32.

    Optionally fuses a residual add (+ReLU) in the epilogue.
    Returns (M, Np) in out_dtype (padded rows stripped, columns kept padded).
    """
    M, K = a.shape
    Kp, Np = w.shape
    assert Kp >= K and Np % 128 == 0

    tn = _pick_tn(Np)
    out_isz = jnp.dtype(out_dtype).itemsize
    budget = _vmem_budget()
    use_buffered = _weight_pipeline_supported() and (Np // tn) >= 3
    wbuf = 3 if use_buffered else 2
    tm = _pick_tm(M, Kp, tn, out_isz, residual is not None, wbuf, budget)
    Mp = _round_up(M, tm)

    if Mp != M or Kp != K:
        a = jnp.pad(a, ((0, Mp - M), (0, Kp - K)))

    if use_buffered:
        w_spec = pl.BlockSpec((Kp, tn), lambda i, j: (0, j),
                              pipeline_mode=pl.Buffered(3))
    else:
        w_spec = pl.BlockSpec((Kp, tn), lambda i, j: (0, j))

    in_specs = [
        pl.BlockSpec((tm, Kp), lambda i, j: (i, 0)),
        w_spec,
        pl.BlockSpec((1, tn), lambda i, j: (0, j)),
    ]
    args = [a, w, bias]
    if residual is not None:
        if residual.shape[0] != Mp:
            residual = jnp.pad(residual, ((0, Mp - residual.shape[0]), (0, 0)))
        in_specs.append(pl.BlockSpec((tm, tn), lambda i, j: (i, j)))
        args.append(residual)
        kernel = functools.partial(_mm_bias_res_kernel, relu=relu)
    else:
        kernel = functools.partial(_mm_bias_kernel, relu=relu)

    ws = _working_set(tm, Kp, tn, out_isz, residual is not None, wbuf)
    vmem_limit = int(min(max(32 << 20, ws + (4 << 20)), budget))

    grid = (Mp // tm, Np // tn)
    cost = pl.CostEstimate(
        flops=2 * Mp * Kp * Np,
        transcendentals=0,
        bytes_accessed=int(Mp * Kp * 2 + Kp * Np * 2 + Mp * Np * out_isz),
    )

    out = pl.pallas_call(
        kernel,
        out_shape=jax.ShapeDtypeStruct((Mp, Np), out_dtype),
        grid_spec=pltpu.PrefetchScalarGridSpec(
            num_scalar_prefetch=0,
            grid=grid,
            in_specs=in_specs,
            out_specs=pl.BlockSpec((tm, tn), lambda i, j: (i, j)),
        ),
        compiler_params=pltpu.CompilerParams(
            dimension_semantics=("parallel", "parallel"),
            vmem_limit_bytes=vmem_limit),
        cost_estimate=cost,
    )(*args)
    return out[:M]


# --------------------------------------------------------------------------
# Conv / pool wrappers (NHWC, bf16 activations, channels stored 128-padded)
# --------------------------------------------------------------------------

def _im2col_nhwc(x, k, stride, pad):
    """(N,H,W,C) -> (N*Ho*Wo, k*k*C); K ordered as (kh, kw, cin).

    TODO(synk): replace with an in-kernel tap-streaming reduction axis to
    avoid materializing the k*k expansion in HBM.
    """
    N, H, W, C = x.shape
    Ho = (H + 2 * pad - k) // stride + 1
    Wo = (W + 2 * pad - k) // stride + 1
    xp = jnp.pad(x, ((0, 0), (pad, pad), (pad, pad), (0, 0)))
    cols = []
    for i in range(k):
        for j in range(k):
            cols.append(xp[:, i:i + stride * Ho:stride,
                           j:j + stride * Wo:stride, :])
    patches = jnp.stack(cols, axis=3)                  # (N, Ho, Wo, k*k, C)
    a = patches.reshape(N * Ho * Wo, k * k * C)
    return a, (N, Ho, Wo)


@functools.partial(jax.jit, static_argnames=("k", "stride", "pad", "relu"))
def conv_bn_act(x, w, bias, residual=None, *, k, stride, pad, relu):
    """Conv(k,stride,pad) + folded-BN bias (+ fused residual) + ReLU. NHWC.

    Output keeps the 128-padded channel storage (w.shape[1]); padded channels
    are exactly zero by construction (zero weight columns / zero bias).
    """
    x = x.astype(jnp.bfloat16)
    c_store = w.shape[1]
    if k == 1:
        if stride > 1:
            # TODO(synk): fold the stride-2 row selection into the matmul
            # index math / a strided DMA instead of this XLA slice copy.
            x = x[:, ::stride, ::stride, :]
        N, Ho, Wo, _ = x.shape
        a = x.reshape(N * Ho * Wo, x.shape[-1])        # no im2col for 1x1
    else:
        a, (N, Ho, Wo) = _im2col_nhwc(x, k, stride, pad)
    res2d = None
    if residual is not None:
        res2d = residual.astype(jnp.bfloat16).reshape(N * Ho * Wo, -1)
    out = _matmul_bias(a, w, bias, relu=relu, residual=res2d,
                       out_dtype=jnp.bfloat16)
    return out.reshape(N, Ho, Wo, c_store)


@jax.jit
def maxpool_3x3_s2_p1(x):
    # Channel dim is stored 128-padded => lane-dense loads/stores here.
    N, H, W, C = x.shape
    k, stride, pad = 3, 2, 1
    Ho = (H + 2 * pad - k) // stride + 1
    Wo = (W + 2 * pad - k) // stride + 1
    xp = jnp.pad(x, ((0, 0), (pad, pad), (pad, pad), (0, 0)),
                 constant_values=-jnp.inf)
    wins = [xp[:, i:i + stride * Ho:stride, j:j + stride * Wo:stride, :]
            for i in range(k) for j in range(k)]
    stacked = jnp.stack(wins, axis=0).reshape(9, N * Ho * Wo, C)
    M = N * Ho * Wo
    tm = 256 if M >= 256 else _round_up(M, 16)
    Mp = _round_up(M, tm)
    if Mp != M:
        stacked = jnp.pad(stacked, ((0, 0), (0, Mp - M), (0, 0)),
                          constant_values=-jnp.inf)
    out = pl.pallas_call(
        _max9_kernel,
        out_shape=jax.ShapeDtypeStruct((Mp, C), x.dtype),
        grid_spec=pltpu.PrefetchScalarGridSpec(
            num_scalar_prefetch=0,
            grid=(Mp // tm,),
            in_specs=[pl.BlockSpec((9, tm, C), lambda i: (0, i, 0))],
            out_specs=pl.BlockSpec((tm, C), lambda i: (i, 0)),
        ),
        compiler_params=pltpu.CompilerParams(
            dimension_semantics=("parallel",)),
    )(stacked)
    return out[:M].reshape(N, Ho, Wo, C)


@jax.jit
def avgpool_linear(x, w, b):
    """Fused adaptive-avgpool(1,1) + flatten + Linear classifier."""
    N, H, W, C = x.shape
    HW = H * W
    xr = x.reshape(N, HW, C).astype(jnp.bfloat16)
    bn = 8
    Npad = _round_up(N, bn)
    if Npad != N:
        xr = jnp.pad(xr, ((0, Npad - N), (0, 0), (0, 0)))
    Kc, Npc = w.shape
    out = pl.pallas_call(
        _head_kernel,
        out_shape=jax.ShapeDtypeStruct((Npad, Npc), jnp.float32),
        grid_spec=pltpu.PrefetchScalarGridSpec(
            num_scalar_prefetch=0,
            grid=(Npad // bn,),
            in_specs=[pl.BlockSpec((bn, HW, C), lambda i: (i, 0, 0)),
                      pl.BlockSpec((Kc, Npc), lambda i: (0, 0)),
                      pl.BlockSpec((1, Npc), lambda i: (0, 0))],
            out_specs=pl.BlockSpec((bn, Npc), lambda i: (i, 0)),
        ),
        compiler_params=pltpu.CompilerParams(
            dimension_semantics=("parallel",)),
    )(xr, w, b)
    return out[:N]


# --------------------------------------------------------------------------
# Deterministic parameter construction (ResNet-101, BN folded, pre-padded)
# --------------------------------------------------------------------------

_BN_EPS = 1e-5


def _conv_bn_params(key, cin, cout, k, cin_store=None):
    """Conv+BN folded weights laid out for the NHWC im2col matmul.

    K rows ordered (kh, kw, cin_store) with zero rows for cin..cin_store-1;
    K padded to a multiple of 128, Cout padded to a multiple of 128.
    """
    if cin_store is None:
        cin_store = cin
    kw_, kg, kb, km, kv = jax.random.split(key, 5)
    fan_in = cin * k * k
    w = jax.random.normal(kw_, (cout, cin, k, k), jnp.float32) * (
        0.5 * (2.0 / fan_in) ** 0.5)
    gamma = 1.0 + 0.1 * jax.random.normal(kg, (cout,), jnp.float32)
    beta = 0.1 * jax.random.normal(kb, (cout,), jnp.float32)
    r_mean = 0.1 * jax.random.normal(km, (cout,), jnp.float32)
    r_var = jnp.abs(1.0 + 0.1 * jax.random.normal(kv, (cout,), jnp.float32))
    scale = gamma / jnp.sqrt(r_var + _BN_EPS)
    w_folded = w * scale[:, None, None, None]
    b_folded = beta - r_mean * scale
    if cin_store != cin:
        w_folded = jnp.pad(w_folded,
                           ((0, 0), (0, cin_store - cin), (0, 0), (0, 0)))
    K = cin_store * k * k
    Kp = _round_up(K, 128)
    Np = _round_up(cout, 128)
    w_mat = w_folded.transpose(2, 3, 1, 0).reshape(K, cout)
    w_mat = jnp.pad(w_mat, ((0, Kp - K), (0, Np - cout))).astype(jnp.bfloat16)
    bias = jnp.pad(b_folded, (0, Np - cout)).reshape(1, Np).astype(jnp.float32)
    return {"w": w_mat, "b": bias}


def _bottleneck_params(key, cin, cin_store, width, cout, has_down):
    ks = jax.random.split(key, 4)
    w_store = _round_up(width, 128)
    p = {
        "conv1": _conv_bn_params(ks[0], cin, width, 1, cin_store=cin_store),
        "conv2": _conv_bn_params(ks[1], width, width, 3, cin_store=w_store),
        "conv3": _conv_bn_params(ks[2], width, cout, 1, cin_store=w_store),
    }
    if has_down:
        p["down"] = _conv_bn_params(ks[3], cin, cout, 1, cin_store=cin_store)
    return p


def init_resnet101_params(key, num_classes):
    params = {}
    key, k0 = jax.random.split(key)
    params["conv1"] = _conv_bn_params(k0, 3, 64, 7)        # stem, stored as 128

    cfg = [(3, 64, 1), (4, 128, 2), (23, 256, 2), (3, 512, 2)]  # ResNet-101
    cin, cin_store = 64, 128
    layers = []
    for (nblocks, width, stride) in cfg:
        cout = width * 4
        blocks = []
        for bi in range(nblocks):
            key, bk = jax.random.split(key)
            s = stride if bi == 0 else 1
            b_cin = cin if bi == 0 else cout
            b_cin_store = cin_store if bi == 0 else cout
            blocks.append((_bottleneck_params(bk, b_cin, b_cin_store, width,
                                              cout, has_down=(bi == 0)), s))
        layers.append(blocks)
        cin, cin_store = cout, cout
    params["layers"] = layers

    num_features = 2048
    key, kf1, kf2 = jax.random.split(key, 3)
    bound = 1.0 / (num_features ** 0.5)
    Npc = _round_up(num_classes, 128)
    fc_w = jax.random.uniform(kf1, (num_features, num_classes),
                              jnp.float32, -bound, bound)
    fc_b = jax.random.uniform(kf2, (num_classes,), jnp.float32, -bound, bound)
    params["fc_w"] = jnp.pad(fc_w, ((0, 0), (0, Npc - num_classes))
                             ).astype(jnp.bfloat16)
    params["fc_b"] = jnp.pad(fc_b, (0, Npc - num_classes)
                             ).reshape(1, Npc).astype(jnp.float32)
    params["num_classes"] = num_classes
    return params


# --------------------------------------------------------------------------
# Forward pass
# --------------------------------------------------------------------------

def _bottleneck_forward(x, p, stride):
    out = conv_bn_act(x, p["conv1"]["w"], p["conv1"]["b"],
                      k=1, stride=1, pad=0, relu=True)
    out = conv_bn_act(out, p["conv2"]["w"], p["conv2"]["b"],
                      k=3, stride=stride, pad=1, relu=True)
    if "down" in p:
        identity = conv_bn_act(x, p["down"]["w"], p["down"]["b"],
                               k=1, stride=stride, pad=0, relu=False)
    else:
        identity = x
    # residual add + ReLU fused into conv3's matmul epilogue
    return conv_bn_act(out, p["conv3"]["w"], p["conv3"]["b"],
                       residual=identity, k=1, stride=1, pad=0, relu=True)


def resnet101_forward(params, x):
    # NCHW (PyTorch) -> NHWC bf16 activations (one-time glue transpose).
    x = jnp.transpose(x, (0, 2, 3, 1)).astype(jnp.bfloat16)
    # stem (output stored with 128 channels, lanes 64..127 are zero)
    x = conv_bn_act(x, params["conv1"]["w"], params["conv1"]["b"],
                    k=7, stride=2, pad=3, relu=True)
    x = maxpool_3x3_s2_p1(x)
    # layer1..layer4
    for blocks in params["layers"]:
        for (p, s) in blocks:
            x = _bottleneck_forward(x, p, s)
    # adaptive avgpool(1,1) + flatten (fc = Identity) + Linear classifier
    logits = avgpool_linear(x, params["fc_w"], params["fc_b"])
    return logits[:, :params["num_classes"]]


# --------------------------------------------------------------------------
# main
# --------------------------------------------------------------------------

if __name__ == "__main__":
    key = jax.random.PRNGKey(0)
    k_params, k_input = jax.random.split(key)

    NUM_CLASSES = 10
    params = init_resnet101_params(k_params, NUM_CLASSES)

    # Small input consistent with the module: NCHW, 3 input channels.
    x = jax.random.normal(k_input, (2, 3, 32, 32), jnp.float32)

    logits = resnet101_forward(params, x)
    logits = jax.block_until_ready(logits)

    assert logits.shape == (2, NUM_CLASSES)
    assert bool(jnp.all(jnp.isfinite(logits)))
    print("KERNEL_OK")
</pallas_src>

<mosaic_0001>
module attributes {stable_mosaic.version = 11 : i64} {
  func.func @_mm_bias_kernel(%arg0: i32, %arg1: i32, %arg2: memref<512x256xbf16, #tpu.memory_space<vmem>>, %arg3: memref<256x128xbf16, #tpu.memory_space<vmem>>, %arg4: memref<1x128xf32, #tpu.memory_space<vmem>>, %arg5: memref<512x128xbf16, #tpu.memory_space<vmem>>) attributes {dimension_semantics = [#tpu.dimension_semantics<parallel>, #tpu.dimension_semantics<parallel>], iteration_bounds = array<i64: 1, 1>, scalar_prefetch = 0 : i64, scratch_operands = 0 : i64, tpu.core_type = #tpu.core_type<tc>, window_params = [{transform_indices = @transform_0, window_bounds = array<i64: 512, 256>}, {transform_indices = @transform_1, window_bounds = array<i64: 256, 128>}, {transform_indices = @transform_2, window_bounds = array<i64: 1, 128>}, {transform_indices = @transform_3, window_bounds = array<i64: 512, 128>}]} {
    %c0 = arith.constant 0 : index
    %c0_0 = arith.constant 0 : index
    %0 = vector.load %arg2[%c0, %c0_0] : memref<512x256xbf16, #tpu.memory_space<vmem>>, vector<512x256xbf16>
    %c0_1 = arith.constant 0 : index
    %c0_2 = arith.constant 0 : index
    %1 = vector.load %arg3[%c0_1, %c0_2] : memref<256x128xbf16, #tpu.memory_space<vmem>>, vector<256x128xbf16>
    %cst = arith.constant dense<0.000000e+00> : vector<512x128xf32>
    %2 = tpu.matmul %0, %1, %cst {dimension_numbers = #tpu.dot_dimension_numbers<[1], [0], [0], [1], [0, 0, 1, 1], [], []>} : vector<512x256xbf16>, vector<256x128xbf16>, vector<512x128xf32> -> vector<512x128xf32>
    %c0_3 = arith.constant 0 : index
    %c0_4 = arith.constant 0 : index
    %3 = vector.load %arg4[%c0_3, %c0_4] : memref<1x128xf32, #tpu.memory_space<vmem>>, vector<1x128xf32>
    %4 = vector.broadcast %3 : vector<1x128xf32> to vector<512x128xf32>
    %5 = arith.addf %2, %4 : vector<512x128xf32>
    %cst_5 = arith.constant 0.000000e+00 : f32
    %6 = vector.broadcast %cst_5 : f32 to vector<512x128xf32>
    %7 = arith.maximumf %5, %6 : vector<512x128xf32>
    %8 = arith.truncf %7 : vector<512x128xf32> to vector<512x128xbf16>
    %c0_6 = arith.constant 0 : index
    %c0_7 = arith.constant 0 : index
    %9 = vector.load %arg5[%c0_6, %c0_7] : memref<512x128xbf16, #tpu.memory_space<vmem>>, vector<512x128xbf16>
    tpu.vector_store %arg5[%c0_6, %c0_7], %8 {strides = array<i32>} : memref<512x128xbf16, #tpu.memory_space<vmem>>, vector<512x128xbf16>,
    return
  }
  func.func @transform_0(%arg0: i32, %arg1: i32) -> (i32, i32) {
    %c0_i32 = arith.constant 0 : i32
    %c0_i32_0 = arith.constant 0 : i32
    return %arg0, %c0_i32 : i32, i32
  }
  func.func @transform_1(%arg0: i32, %arg1: i32) -> (i32, i32) {
    %c0_i32 = arith.constant 0 : i32
    %c0_i32_0 = arith.constant 0 : i32
    return %c0_i32, %arg1 : i32, i32
  }
  func.func @transform_2(%arg0: i32, %arg1: i32) -> (i32, i32) {
    %c0_i32 = arith.constant 0 : i32
    %c0_i32_0 = arith.constant 0 : i32
    return %c0_i32, %arg1 : i32, i32
  }
  func.func @transform_3(%arg0: i32, %arg1: i32) -> (i32, i32) {
    %c0_i32 = arith.constant 0 : i32
    return %arg0, %arg1 : i32, i32
  }
}

</mosaic_0001>

<llo_original>
// kernel: conv_bn_act.1
$region0: #{conv_bn_act.1}
  #allocation0 [shape = 'u32[]', space=smem, size = 0x4, offset = 0x4, fixed_abs, tag = 'smem constant byte address 0x4 - core index']
  #allocation1 [shape = 'u32[144,128]{1,0:T(1,128)}', space=vmem, size = 0x12000, scoped, tag = 'internal scratch']
  %s0 = inlined_call_operand.vmem [shape: bf16[512,256], index: 0, kind: input, shape index: {}]
  %s1 = inlined_call_operand.vmem [shape: bf16[256,128], index: 1, kind: input, shape index: {}]
  %s2 = inlined_call_operand.vmem [shape: f32[1,128], index: 2, kind: input, shape index: {}]
  %s3 = inlined_call_operand.hbm [shape: bf16[512,128], index: 3, kind: output, shape index: {}]
  %s4 = sld [smem:[#allocation0]]
  $region22: #{conv_bn_act.1} parent=0
    _
  %s6 = ssub.s32 1, %s4
  %s7 = scalar_select 0, %s6, %s4
  $region1: #{conv_bn_act.1} parent=0
    #allocation2 [shape = 'u8[131072]{0}', space=vmem, size = 0x20000, scoped, tag = 'output window, operand 0, single buffered']
    #allocation3 [shape = 's32[1]{0}', space=sflag, size = 0x4, scoped, tag = 'scoped memory for conv_bn_act.1']
    %8 = vsyncpa [#allocation3], 0
    // Predicated region
    $region2: #{conv_bn_act.1} parent=1 // pred_check
      _
    $region3: #{conv_bn_act.1} parent=1 // pred_check_branch
      %10 = sbr.rel (0) target = $region5
    $region4: #{conv_bn_act.1} parent=1 // pred_region
      _
    $region5: #{conv_bn_act.1} parent=1 // pred_fallthru
      _
    // Predicated region
    $region6: #{conv_bn_act.1} parent=1 // pred_check
      _
    $region7: #{conv_bn_act.1} parent=1 // pred_check_branch
      %12 = sbr.rel (0) target = $region9
    $region8: #{conv_bn_act.1} parent=1 // pred_region
      _
    $region9: #{conv_bn_act.1} parent=1 // pred_fallthru
      _
    // Predicated region
    $region10: #{conv_bn_act.1} parent=1 // pred_check
      _
    $region11: #{conv_bn_act.1} parent=1 // pred_check_branch
      %14 = sbr.rel (0) target = $region13
    $region12: #{conv_bn_act.1} parent=1 // pred_region
      _
    $region13: #{conv_bn_act.1} parent=1 // pred_fallthru
      _
    %v16 = vld [vmem:[%s0] sm:$0xff]
    %v17 = vld [vmem:[%s0 + $0x8] sm:$0xff]
    %v18 = vld [vmem:[%s0 + $0x10] sm:$0xff]
    %v19 = vld [vmem:[%s0 + $0x18] sm:$0xff]
    %v20 = vld [vmem:[%s0 + $0x20] sm:$0xff]
    %v21 = vld [vmem:[%s0 + $0x28] sm:$0xff]
    %v22 = vld [vmem:[%s0 + $0x30] sm:$0xff]
    %v23 = vld [vmem:[%s0 + $0x38] sm:$0xff]
    %v24 = vld [vmem:[%s0 + $0x40] sm:$0xff]
    %v25 = vld [vmem:[%s0 + $0x48] sm:$0xff]
    %v26 = vld [vmem:[%s0 + $0x50] sm:$0xff]
    %v27 = vld [vmem:[%s0 + $0x58] sm:$0xff]
    %v28 = vld [vmem:[%s0 + $0x60] sm:$0xff]
    %v29 = vld [vmem:[%s0 + $0x68] sm:$0xff]
    %v30 = vld [vmem:[%s0 + $0x70] sm:$0xff]
    %v31 = vld [vmem:[%s0 + $0x78] sm:$0xff]
    %v32 = vld [vmem:[%s0 + $0x80] sm:$0xff]
    %v33 = vld [vmem:[%s0 + $0x88] sm:$0xff]
    %v34 = vld [vmem:[%s0 + $0x90] sm:$0xff]
    %v35 = vld [vmem:[%s0 + $0x98] sm:$0xff]
    %v36 = vld [vmem:[%s0 + $0xa0] sm:$0xff]
    %v37 = vld [vmem:[%s0 + $0xa8] sm:$0xff]
    %v38 = vld [vmem:[%s0 + $0xb0] sm:$0xff]
    %v39 = vld [vmem:[%s0 + $0xb8] sm:$0xff]
    %v40 = vld [vmem:[%s0 + $0xc0] sm:$0xff]
    %v41 = vld [vmem:[%s0 + $0xc8] sm:$0xff]
    %v42 = vld [vmem:[%s0 + $0xd0] sm:$0xff]
    %v43 = vld [vmem:[%s0 + $0xd8] sm:$0xff]
    %v44 = vld [vmem:[%s0 + $0xe0] sm:$0xff]
    %v45 = vld [vmem:[%s0 + $0xe8] sm:$0xff]
    %v46 = vld [vmem:[%s0 + $0xf0] sm:$0xff]
    %v47 = vld [vmem:[%s0 + $0xf8] sm:$0xff]
    %v48 = vld [vmem:[%s0 + $0x100] sm:$0xff]
    %v49 = vld [vmem:[%s0 + $0x108] sm:$0xff]
    %v50 = vld [vmem:[%s0 + $0x110] sm:$0xff]
    %v51 = vld [vmem:[%s0 + $0x118] sm:$0xff]
    %v52 = vld [vmem:[%s0 + $0x120] sm:$0xff]
    %v53 = vld [vmem:[%s0 + $0x128] sm:$0xff]
    %v54 = vld [vmem:[%s0 + $0x130] sm:$0xff]
    %v55 = vld [vmem:[%s0 + $0x138] sm:$0xff]
    %v56 = vld [vmem:[%s0 + $0x140] sm:$0xff]
    %v57 = vld [vmem:[%s0 + $0x148] sm:$0xff]
    %v58 = vld [vmem:[%s0 + $0x150] sm:$0xff]
    %v59 = vld [vmem:[%s0 + $0x158] sm:$0xff]
    %v60 = vld [vmem:[%s0 + $0x160] sm:$0xff]
    %v61 = vld [vmem:[%s0 + $0x168] sm:$0xff]
    %v62 = vld [vmem:[%s0 + $0x170] sm:$0xff]
    %v63 = vld [vmem:[%s0 + $0x178] sm:$0xff]
    %v64 = vld [vmem:[%s0 + $0x180] sm:$0xff]
    %v65 = vld [vmem:[%s0 + $0x188] sm:$0xff]
    %v66 = vld [vmem:[%s0 + $0x190] sm:$0xff]
    %v67 = vld [vmem:[%s0 + $0x198] sm:$0xff]
    %v68 = vld [vmem:[%s0 + $0x1a0] sm:$0xff]
    %v69 = vld [vmem:[%s0 + $0x1a8] sm:$0xff]
    %v70 = vld [vmem:[%s0 + $0x1b0] sm:$0xff]
    %v71 = vld [vmem:[%s0 + $0x1b8] sm:$0xff]
    %v72 = vld [vmem:[%s0 + $0x1c0] sm:$0xff]
    %v73 = vld [vmem:[%s0 + $0x1c8] sm:$0xff]
    %v74 = vld [vmem:[%s0 + $0x1d0] sm:$0xff]
    %v75 = vld [vmem:[%s0 + $0x1d8] sm:$0xff]
    %v76 = vld [vmem:[%s0 + $0x1e0] sm:$0xff]
    %v77 = vld [vmem:[%s0 + $0x1e8] sm:$0xff]
    %v78 = vld [vmem:[%s0 + $0x1f0] sm:$0xff]
    %v79 = vld [vmem:[%s0 + $0x1f8] sm:$0xff]
    %v80 = vld [vmem:[%s1] sm:$0xf]
    %v81 = vld [vmem:[%s1 + $0x4] sm:$0xf]
    %v82 = vld [vmem:[%s1 + $0x8] sm:$0xf]
    %v83 = vld [vmem:[%s1 + $0xc] sm:$0xf]
    %v84 = vld [vmem:[%s1 + $0x10] sm:$0xf]
    %v85 = vld [vmem:[%s1 + $0x14] sm:$0xf]
    %v86 = vld [vmem:[%s1 + $0x18] sm:$0xf]
    %v87 = vld [vmem:[%s1 + $0x1c] sm:$0xf]
    %v88 = vld [vmem:[%s1 + $0x20] sm:$0xf]
    %v89 = vld [vmem:[%s1 + $0x24] sm:$0xf]
    %v90 = vld [vmem:[%s1 + $0x28] sm:$0xf]
    %v91 = vld [vmem:[%s1 + $0x2c] sm:$0xf]
    %v92 = vld [vmem:[%s1 + $0x30] sm:$0xf]
    %v93 = vld [vmem:[%s1 + $0x34] sm:$0xf]
    %v94 = vld [vmem:[%s1 + $0x38] sm:$0xf]
    %v95 = vld [vmem:[%s1 + $0x3c] sm:$0xf]
    %v96 = vld [vmem:[%s1 + $0x40] sm:$0xf]
    %v97 = vld [vmem:[%s1 + $0x44] sm:$0xf]
    %v98 = vld [vmem:[%s1 + $0x48] sm:$0xf]
    %v99 = vld [vmem:[%s1 + $0x4c] sm:$0xf]
    %v100 = vld [vmem:[%s1 + $0x50] sm:$0xf]
    %v101 = vld [vmem:[%s1 + $0x54] sm:$0xf]
    %v102 = vld [vmem:[%s1 + $0x58] sm:$0xf]
    %v103 = vld [vmem:[%s1 + $0x5c] sm:$0xf]
    %v104 = vld [vmem:[%s1 + $0x60] sm:$0xf]
    %v105 = vld [vmem:[%s1 + $0x64] sm:$0xf]
    %v106 = vld [vmem:[%s1 + $0x68] sm:$0xf]
    %v107 = vld [vmem:[%s1 + $0x6c] sm:$0xf]
    %v108 = vld [vmem:[%s1 + $0x70] sm:$0xf]
    %v109 = vld [vmem:[%s1 + $0x74] sm:$0xf]
    %v110 = vld [vmem:[%s1 + $0x78] sm:$0xf]
    %v111 = vld [vmem:[%s1 + $0x7c] sm:$0xf]
    %v112 = vld [vmem:[%s2] sm:$0x1]
    %v114 = vlaneseq
    %v115 = vshrl.u32 %v114, 7
    %v116 = vsub.s32 0, %v115
    %v117 = vrot.slane %v112, %v116
    %v183 = vunpack.c.l.b16 %v16
    %v184 = vunpack.c.h.b16 %v16
    %v185 = vunpack.c.l.b16 %v17
    %v186 = vunpack.c.h.b16 %v17
    %v187 = vunpack.c.l.b16 %v18
    %v188 = vunpack.c.h.b16 %v18
    %v189 = vunpack.c.l.b16 %v19
    %v190 = vunpack.c.h.b16 %v19
    %v191 = vunpack.c.l.b16 %v20
    %v192 = vunpack.c.h.b16 %v20
    %v193 = vunpack.c.l.b16 %v21
    %v194 = vunpack.c.h.b16 %v21
    %v195 = vunpack.c.l.b16 %v22
    %v196 = vunpack.c.h.b16 %v22
    %v197 = vunpack.c.l.b16 %v23
    %v198 = vunpack.c.h.b16 %v23
    %v199 = vunpack.c.l.b16 %v24
    %v200 = vunpack.c.h.b16 %v24
    %v201 = vunpack.c.l.b16 %v25
    %v202 = vunpack.c.h.b16 %v25
    %v203 = vunpack.c.l.b16 %v26
    %v204 = vunpack.c.h.b16 %v26
    %v205 = vunpack.c.l.b16 %v27
    %v206 = vunpack.c.h.b16 %v27
    %v207 = vunpack.c.l.b16 %v28
    %v208 = vunpack.c.h.b16 %v28
    %v209 = vunpack.c.l.b16 %v29
    %v210 = vunpack.c.h.b16 %v29
    %v211 = vunpack.c.l.b16 %v30
    %v212 = vunpack.c.h.b16 %v30
    %v213 = vunpack.c.l.b16 %v31
    %v214 = vunpack.c.h.b16 %v31
    %v215 = vunpack.c.l.b16 %v32
    %v216 = vunpack.c.h.b16 %v32
    %v217 = vunpack.c.l.b16 %v33
    %v218 = vunpack.c.h.b16 %v33
    %v219 = vunpack.c.l.b16 %v34
    %v220 = vunpack.c.h.b16 %v34
    %v221 = vunpack.c.l.b16 %v35
    %v222 = vunpack.c.h.b16 %v35
    %v223 = vunpack.c.l.b16 %v36
    %v224 = vunpack.c.h.b16 %v36
    %v225 = vunpack.c.l.b16 %v37
    %v226 = vunpack.c.h.b16 %v37
    %v227 = vunpack.c.l.b16 %v38
    %v228 = vunpack.c.h.b16 %v38
    %v229 = vunpack.c.l.b16 %v39
    %v230 = vunpack.c.h.b16 %v39
    %v231 = vunpack.c.l.b16 %v40
    %v232 = vunpack.c.h.b16 %v40
    %v233 = vunpack.c.l.b16 %v41
    %v234 = vunpack.c.h.b16 %v41
    %v235 = vunpack.c.l.b16 %v42
    %v236 = vunpack.c.h.b16 %v42
    %v237 = vunpack.c.l.b16 %v43
    %v238 = vunpack.c.h.b16 %v43
    %v239 = vunpack.c.l.b16 %v44
    %v240 = vunpack.c.h.b16 %v44
    %v241 = vunpack.c.l.b16 %v45
    %v242 = vunpack.c.h.b16 %v45
    %v243 = vunpack.c.l.b16 %v46
    %v244 = vunpack.c.h.b16 %v46
    %v245 = vunpack.c.l.b16 %v47
    %v246 = vunpack.c.h.b16 %v47
    %v247 = vunpack.c.l.b16 %v48
    %v248 = vunpack.c.h.b16 %v48
    %v249 = vunpack.c.l.b16 %v49
    %v250 = vunpack.c.h.b16 %v49
    %v251 = vunpack.c.l.b16 %v50
    %v252 = vunpack.c.h.b16 %v50
    %v253 = vunpack.c.l.b16 %v51
    %v254 = vunpack.c.h.b16 %v51
    %v255 = vunpack.c.l.b16 %v52
    %v256 = vunpack.c.h.b16 %v52
    %v257 = vunpack.c.l.b16 %v53
    %v258 = vunpack.c.h.b16 %v53
    %v259 = vunpack.c.l.b16 %v54
    %v260 = vunpack.c.h.b16 %v54
    %v261 = vunpack.c.l.b16 %v55
    %v262 = vunpack.c.h.b16 %v55
    %v263 = vunpack.c.l.b16 %v56
    %v264 = vunpack.c.h.b16 %v56
    %v265 = vunpack.c.l.b16 %v57
    %v266 = vunpack.c.h.b16 %v57
    %v267 = vunpack.c.l.b16 %v58
    %v268 = vunpack.c.h.b16 %v58
    %v269 = vunpack.c.l.b16 %v59
    %v270 = vunpack.c.h.b16 %v59
    %v271 = vunpack.c.l.b16 %v60
    %v272 = vunpack.c.h.b16 %v60
    %v273 = vunpack.c.l.b16 %v61
    %v274 = vunpack.c.h.b16 %v61
    %v275 = vunpack.c.l.b16 %v62
    %v276 = vunpack.c.h.b16 %v62
    %v277 = vunpack.c.l.b16 %v63
    %v278 = vunpack.c.h.b16 %v63
    %v279 = vunpack.c.l.b16 %v64
    %v280 = vunpack.c.h.b16 %v64
    %v281 = vunpack.c.l.b16 %v65
    %v282 = vunpack.c.h.b16 %v65
    %v283 = vunpack.c.l.b16 %v66
    %v284 = vunpack.c.h.b16 %v66
    %v285 = vunpack.c.l.b16 %v67
    %v286 = vunpack.c.h.b16 %v67
    %v287 = vunpack.c.l.b16 %v68
    %v288 = vunpack.c.h.b16 %v68
    %v289 = vunpack.c.l.b16 %v69
    %v290 = vunpack.c.h.b16 %v69
    %v291 = vunpack.c.l.b16 %v70
    %v292 = vunpack.c.h.b16 %v70
    %v293 = vunpack.c.l.b16 %v71
    %v294 = vunpack.c.h.b16 %v71
    %v295 = vunpack.c.l.b16 %v72
    %v296 = vunpack.c.h.b16 %v72
    %v297 = vunpack.c.l.b16 %v73
    %v298 = vunpack.c.h.b16 %v73
    %v299 = vunpack.c.l.b16 %v74
    %v300 = vunpack.c.h.b16 %v74
    %v301 = vunpack.c.l.b16 %v75
    %v302 = vunpack.c.h.b16 %v75
    %v303 = vunpack.c.l.b16 %v76
    %v304 = vunpack.c.h.b16 %v76
    %v305 = vunpack.c.l.b16 %v77
    %v306 = vunpack.c.h.b16 %v77
    %v307 = vunpack.c.l.b16 %v78
    %v308 = vunpack.c.h.b16 %v78
    %v309 = vunpack.c.l.b16 %v79
    %v310 = vunpack.c.h.b16 %v79
    %v311 = vpack.c.b16 %v185, %v183
    %v312 = vpack.c.b16 %v186, %v184
    %v313 = vpack.c.b16 %v189, %v187
    %v314 = vpack.c.b16 %v190, %v188
    %v315 = vpack.c.b16 %v193, %v191
    %v316 = vpack.c.b16 %v194, %v192
    %v317 = vpack.c.b16 %v197, %v195
    %v318 = vpack.c.b16 %v198, %v196
    %v319 = vpack.c.b16 %v201, %v199
    %v320 = vpack.c.b16 %v202, %v200
    %v321 = vpack.c.b16 %v205, %v203
    %v322 = vpack.c.b16 %v206, %v204
    %v323 = vpack.c.b16 %v209, %v207
    %v324 = vpack.c.b16 %v210, %v208
    %v325 = vpack.c.b16 %v213, %v211
    %v326 = vpack.c.b16 %v214, %v212
    %v327 = vpack.c.b16 %v217, %v215
    %v328 = vpack.c.b16 %v218, %v216
    %v329 = vpack.c.b16 %v221, %v219
    %v330 = vpack.c.b16 %v222, %v220
    %v331 = vpack.c.b16 %v225, %v223
    %v332 = vpack.c.b16 %v226, %v224
    %v333 = vpack.c.b16 %v229, %v227
    %v334 = vpack.c.b16 %v230, %v228
    %v335 = vpack.c.b16 %v233, %v231
    %v336 = vpack.c.b16 %v234, %v232
    %v337 = vpack.c.b16 %v237, %v235
    %v338 = vpack.c.b16 %v238, %v236
    %v339 = vpack.c.b16 %v241, %v239
    %v340 = vpack.c.b16 %v242, %v240
    %v341 = vpack.c.b16 %v245, %v243
    %v342 = vpack.c.b16 %v246, %v244
    %v343 = vpack.c.b16 %v249, %v247
    %v344 = vpack.c.b16 %v250, %v248
    %v345 = vpack.c.b16 %v253, %v251
    %v346 = vpack.c.b16 %v254, %v252
    %v347 = vpack.c.b16 %v257, %v255
    %v348 = vpack.c.b16 %v258, %v256
    %v349 = vpack.c.b16 %v261, %v259
    %v350 = vpack.c.b16 %v262, %v260
    %v351 = vpack.c.b16 %v265, %v263
    %v352 = vpack.c.b16 %v266, %v264
    %v353 = vpack.c.b16 %v269, %v267
    %v354 = vpack.c.b16 %v270, %v268
    %v355 = vpack.c.b16 %v273, %v271
    %v356 = vpack.c.b16 %v274, %v272
    %v357 = vpack.c.b16 %v277, %v275
    %v358 = vpack.c.b16 %v278, %v276
    %v359 = vpack.c.b16 %v281, %v279
    %v360 = vpack.c.b16 %v282, %v280
    %v361 = vpack.c.b16 %v285, %v283
    %v362 = vpack.c.b16 %v286, %v284
    %v363 = vpack.c.b16 %v289, %v287
    %v364 = vpack.c.b16 %v290, %v288
    %v365 = vpack.c.b16 %v293, %v291
    %v366 = vpack.c.b16 %v294, %v292
    %v367 = vpack.c.b16 %v297, %v295
    %v368 = vpack.c.b16 %v298, %v296
    %v369 = vpack.c.b16 %v301, %v299
    %v370 = vpack.c.b16 %v302, %v300
    %v371 = vpack.c.b16 %v305, %v303
    %v372 = vpack.c.b16 %v306, %v304
    %v373 = vpack.c.b16 %v309, %v307
    %v374 = vpack.c.b16 %v310, %v308
    %v471 = vunpack.c.l.b16 %v80
    %v472 = vunpack.c.l.b16 %v81
    %v473 = vunpack.c.l.b16 %v82
    %v474 = vunpack.c.l.b16 %v83
    %v475 = vunpack.c.l.b16 %v84
    %v476 = vunpack.c.l.b16 %v85
    %v477 = vunpack.c.l.b16 %v86
    %v478 = vunpack.c.l.b16 %v87
    %v479 = vunpack.c.l.b16 %v88
    %v480 = vunpack.c.l.b16 %v89
    %v481 = vunpack.c.l.b16 %v90
    %v482 = vunpack.c.l.b16 %v91
    %v483 = vunpack.c.l.b16 %v92
    %v484 = vunpack.c.l.b16 %v93
    %v485 = vunpack.c.l.b16 %v94
    %v486 = vunpack.c.l.b16 %v95
    %v487 = vunpack.c.l.b16 %v96
    %v488 = vunpack.c.l.b16 %v97
    %v489 = vunpack.c.l.b16 %v98
    %v490 = vunpack.c.l.b16 %v99
    %v491 = vunpack.c.l.b16 %v100
    %v492 = vunpack.c.l.b16 %v101
    %v493 = vunpack.c.l.b16 %v102
    %v494 = vunpack.c.l.b16 %v103
    %v495 = vunpack.c.l.b16 %v104
    %v496 = vunpack.c.l.b16 %v105
    %v497 = vunpack.c.l.b16 %v106
    %v498 = vunpack.c.l.b16 %v107
    %v499 = vunpack.c.l.b16 %v108
    %v500 = vunpack.c.l.b16 %v109
    %v501 = vunpack.c.l.b16 %v110
    %v502 = vunpack.c.l.b16 %v111
    %v503 = vpack.c.b16 %v472, %v471
    %v504 = vpack.c.b16 %v474, %v473
    %v505 = vpack.c.b16 %v476, %v475
    %v506 = vpack.c.b16 %v478, %v477
    %v507 = vpack.c.b16 %v480, %v479
    %v508 = vpack.c.b16 %v482, %v481
    %v509 = vpack.c.b16 %v484, %v483
    %v510 = vpack.c.b16 %v486, %v485
    %v511 = vpack.c.b16 %v488, %v487
    %v512 = vpack.c.b16 %v490, %v489
    %v513 = vpack.c.b16 %v492, %v491
    %v514 = vpack.c.b16 %v494, %v493
    %v515 = vpack.c.b16 %v496, %v495
    %v516 = vpack.c.b16 %v498, %v497
    %v517 = vpack.c.b16 %v500, %v499
    %v518 = vpack.c.b16 %v502, %v501
    %535 = vmatprep.subr.bf16.mxu0 0
    %536 = vmatpush1.bf16.msra.mxu0 %v503
    %537 = vmatprep.subr.bf16.mxu0 0
    %538 = vmatpush1.bf16.msra.mxu0 %v504
    %539 = vmatprep.subr.bf16.mxu0 0
    %540 = vmatpush1.bf16.msra.mxu0 %v505
    %541 = vmatprep.subr.bf16.mxu0 0
    %542 = vmatpush1.bf16.msra.mxu0 %v506
    %543 = vmatprep.subr.bf16.mxu0 0
    %544 = vmatpush1.bf16.msra.mxu0 %v507
    %545 = vmatprep.subr.bf16.mxu0 0
    %546 = vmatpush1.bf16.msra.mxu0 %v508
    %547 = vmatprep.subr.bf16.mxu0 0
    %548 = vmatpush1.bf16.msra.mxu0 %v509
    %549 = vmatprep.subr.bf16.mxu0 0
    %550 = vmatpush1.bf16.msra.mxu0 %v510
    %551 = vmatprep.subr.bf16.mxu0 0
    %552 = vmatpush1.bf16.msra.mxu0 %v511
    %553 = vmatprep.subr.bf16.mxu0 0
    %554 = vmatpush1.bf16.msra.mxu0 %v512
    %555 = vmatprep.subr.bf16.mxu0 0
    %556 = vmatpush1.bf16.msra.mxu0 %v513
    %557 = vmatprep.subr.bf16.mxu0 0
    %558 = vmatpush1.bf16.msra.mxu0 %v514
    %559 = vmatprep.subr.bf16.mxu0 0
    %560 = vmatpush1.bf16.msra.mxu0 %v515
    %561 = vmatprep.subr.bf16.mxu0 0
    %562 = vmatpush1.bf16.msra.mxu0 %v516
    %563 = vmatprep.subr.bf16.mxu0 0
    %564 = vmatpush1.bf16.msra.mxu0 %v517
    %565 = vmatprep.subr.bf16.mxu0 0
    %566 = vmatpush1.bf16.msra.mxu0 %v518
    %567 = vmatprep.mubr.bf16.mxu0 %v312
    %568 = vmatmul.mubr.bf16.gmra.mrb[0].mxu0 %v311
    %v569 = vpop.f32.mrb[0].mxu0
    %v570 = vadd.f32 %v117, %v569
    %v571 = vpop.f32.mrb[0].mxu0
    %v572 = vpop.f32.mrb[0].mxu0
    %v573 = vadd.f32 %v117, %v572
    %v574 = vpop.f32.mrb[0].mxu0
    %575 = vmatprep.mubr.bf16.mxu0 %v314
    %576 = vmatmul.mubr.bf16.gmra.mrb[0].mxu0 %v313
    %v577 = vpop.f32.mrb[0].mxu0
    %v578 = vadd.f32 %v117, %v577
    %v579 = vpop.f32.mrb[0].mxu0
    %v580 = vpop.f32.mrb[0].mxu0
    %v581 = vadd.f32 %v117, %v580
    %v582 = vpop.f32.mrb[0].mxu0
    %583 = vmatprep.mubr.bf16.mxu0 %v316
    %584 = vmatmul.mubr.bf16.gmra.mrb[0].mxu0 %v315
    %v585 = vpop.f32.mrb[0].mxu0
    %v586 = vadd.f32 %v117, %v585
    %v587 = vpop.f32.mrb[0].mxu0
    %v588 = vpop.f32.mrb[0].mxu0
    %v589 = vadd.f32 %v117, %v588
    %v590 = vpop.f32.mrb[0].mxu0
    %591 = vmatprep.mubr.bf16.mxu0 %v318
    %592 = vmatmul.mubr.bf16.gmra.mrb[0].mxu0 %v317
    %v593 = vpop.f32.mrb[0].mxu0
    %v594 = vadd.f32 %v117, %v593
    %v595 = vpop.f32.mrb[0].mxu0
    %v596 = vpop.f32.mrb[0].mxu0
    %v597 = vadd.f32 %v117, %v596
    %v598 = vpop.f32.mrb[0].mxu0
    %599 = vmatprep.mubr.bf16.mxu0 %v320
    %600 = vmatmul.mubr.bf16.gmra.mrb[0].mxu0 %v319
    %v601 = vpop.f32.mrb[0].mxu0
    %v602 = vadd.f32 %v117, %v601
    %v603 = vpop.f32.mrb[0].mxu0
    %v604 = vpop.f32.mrb[0].mxu0
    %v605 = vadd.f32 %v117, %v604
    %v606 = vpop.f32.mrb[0].mxu0
    %607 = vmatprep.mubr.bf16.mxu0 %v322
    %608 = vmatmul.mubr.bf16.gmra.mrb[0].mxu0 %v321
    %v609 = vpop.f32.mrb[0].mxu0
    %v610 = vadd.f32 %v117, %v609
    %v611 = vpop.f32.mrb[0].mxu0
    %v612 = vpop.f32.mrb[0].mxu0
    %v613 = vadd.f32 %v117, %v612
    %v614 = vpop.f32.mrb[0].mxu0
    %615 = vmatprep.mubr.bf16.mxu0 %v324
    %616 = vmatmul.mubr.bf16.gmra.mrb[0].mxu0 %v323
    %v617 = vpop.f32.mrb[0].mxu0
    %v618 = vadd.f32 %v117, %v617
    %v619 = vpop.f32.mrb[0].mxu0
    %v620 = vpop.f32.mrb[0].mxu0
    %v621 = vadd.f32 %v117, %v620
    %v622 = vpop.f32.mrb[0].mxu0
    %623 = vmatprep.mubr.bf16.mxu0 %v326
    %624 = vmatmul.mubr.bf16.gmra.mrb[0].mxu0 %v325
    %v625 = vpop.f32.mrb[0].mxu0
    %v626 = vadd.f32 %v117, %v625
    %v627 = vpop.f32.mrb[0].mxu0
    %v628 = vpop.f32.mrb[0].mxu0
    %v629 = vadd.f32 %v117, %v628
    %v630 = vpop.f32.mrb[0].mxu0
    %631 = vmatprep.mubr.bf16.mxu0 %v328
    %632 = vmatmul.mubr.bf16.gmra.mrb[0].mxu0 %v327
    %v633 = vpop.f32.mrb[0].mxu0
    %v634 = vadd.f32 %v117, %v633
    %v635 = vpop.f32.mrb[0].mxu0
    %v636 = vpop.f32.mrb[0].mxu0
    %v637 = vadd.f32 %v117, %v636
    %v638 = vpop.f32.mrb[0].mxu0
    %639 = vmatprep.mubr.bf16.mxu0 %v330
    %640 = vmatmul.mubr.bf16.gmra.mrb[0].mxu0 %v329
    %v641 = vpop.f32.mrb[0].mxu0
    %v642 = vadd.f32 %v117, %v641
    %v643 = vpop.f32.mrb[0].mxu0
    %v644 = vpop.f32.mrb[0].mxu0
    %v645 = vadd.f32 %v117, %v644
    %v646 = vpop.f32.mrb[0].mxu0
    %647 = vmatprep.mubr.bf16.mxu0 %v332
    %648 = vmatmul.mubr.bf16.gmra.mrb[0].mxu0 %v331
    %v649 = vpop.f32.mrb[0].mxu0
    %v650 = vadd.f32 %v117, %v649
    %v651 = vpop.f32.mrb[0].mxu0
    %v652 = vpop.f32.mrb[0].mxu0
    %v653 = vadd.f32 %v117, %v652
    %v654 = vpop.f32.mrb[0].mxu0
    %655 = vmatprep.mubr.bf16.mxu0 %v334
    %656 = vmatmul.mubr.bf16.gmra.mrb[0].mxu0 %v333
    %v657 = vpop.f32.mrb[0].mxu0
    %v658 = vadd.f32 %v117, %v657
    %v659 = vpop.f32.mrb[0].mxu0
    %v660 = vpop.f32.mrb[0].mxu0
    %v661 = vadd.f32 %v117, %v660
    %v662 = vpop.f32.mrb[0].mxu0
    %663 = vmatprep.mubr.bf16.mxu0 %v336
    %664 = vmatmul.mubr.bf16.gmra.mrb[0].mxu0 %v335
    %v665 = vpop.f32.mrb[0].mxu0
    %v666 = vadd.f32 %v117, %v665
    %v667 = vpop.f32.mrb[0].mxu0
    %v668 = vpop.f32.mrb[0].mxu0
    %v669 = vadd.f32 %v117, %v668
    %v670 = vpop.f32.mrb[0].mxu0
    %671 = vmatprep.mubr.bf16.mxu0 %v338
    %672 = vmatmul.mubr.bf16.gmra.mrb[0].mxu0 %v337
    %v673 = vpop.f32.mrb[0].mxu0
    %v674 = vadd.f32 %v117, %v673
    %v675 = vpop.f32.mrb[0].mxu0
    %v676 = vpop.f32.mrb[0].mxu0
    %v677 = vadd.f32 %v117, %v676
    %v678 = vpop.f32.mrb[0].mxu0
    %679 = vmatprep.mubr.bf16.mxu0 %v340
    %680 = vmatmul.mubr.bf16.gmra.mrb[0].mxu0 %v339
    %v681 = vpop.f32.mrb[0].mxu0
    %v682 = vadd.f32 %v117, %v681
    %v683 = vpop.f32.mrb[0].mxu0
    %v684 = vpop.f32.mrb[0].mxu0
    %v685 = vadd.f32 %v117, %v684
    %v686 = vpop.f32.mrb[0].mxu0
    %687 = vmatprep.mubr.bf16.mxu0 %v342
    %688 = vmatmul.mubr.bf16.gmra.mrb[0].mxu0 %v341
    %v689 = vpop.f32.mrb[0].mxu0
    %v690 = vadd.f32 %v117, %v689
    %v691 = vpop.f32.mrb[0].mxu0
    %v692 = vpop.f32.mrb[0].mxu0
    %v693 = vadd.f32 %v117, %v692
    %v694 = vpop.f32.mrb[0].mxu0
    %695 = vmatprep.mubr.bf16.mxu0 %v344
    %696 = vmatmul.mubr.bf16.gmra.mrb[0].mxu0 %v343
    %v697 = vpop.f32.mrb[0].mxu0
    %v698 = vadd.f32 %v117, %v697
    %v699 = vpop.f32.mrb[0].mxu0
    %v700 = vpop.f32.mrb[0].mxu0
    %v701 = vadd.f32 %v117, %v700
    %v702 = vpop.f32.mrb[0].mxu0
    %703 = vmatprep.mubr.bf16.mxu0 %v346
    %704 = vmatmul.mubr.bf16.gmra.mrb[0].mxu0 %v345
    %v705 = vpop.f32.mrb[0].mxu0
    %v706 = vadd.f32 %v117, %v705
    %v707 = vpop.f32.mrb[0].mxu0
    %v708 = vpop.f32.mrb[0].mxu0
    %v709 = vadd.f32 %v117, %v708
    %v710 = vpop.f32.mrb[0].mxu0
    %711 = vmatprep.mubr.bf16.mxu0 %v348
    %712 = vmatmul.mubr.bf16.gmra.mrb[0].mxu0 %v347
    %v713 = vpop.f32.mrb[0].mxu0
    %v714 = vadd.f32 %v117, %v713
    %v715 = vpop.f32.mrb[0].mxu0
    %v716 = vpop.f32.mrb[0].mxu0
    %v717 = vadd.f32 %v117, %v716
    %v718 = vpop.f32.mrb[0].mxu0
    %719 = vmatprep.mubr.bf16.mxu0 %v350
    %720 = vmatmul.mubr.bf16.gmra.mrb[0].mxu0 %v349
    %v721 = vpop.f32.mrb[0].mxu0
    %v722 = vadd.f32 %v117, %v721
    %v723 = vpop.f32.mrb[0].mxu0
    %v724 = vpop.f32.mrb[0].mxu0
    %v725 = vadd.f32 %v117, %v724
    %v726 = vpop.f32.mrb[0].mxu0
    %727 = vmatprep.mubr.bf16.mxu0 %v352
    %728 = vmatmul.mubr.bf16.gmra.mrb[0].mxu0 %v351
    %v729 = vpop.f32.mrb[0].mxu0
    %v730 = vadd.f32 %v117, %v729
    %v731 = vpop.f32.mrb[0].mxu0
    %v732 = vpop.f32.mrb[0].mxu0
    %v733 = vadd.f32 %v117, %v732
    %v734 = vpop.f32.mrb[0].mxu0
    %735 = vmatprep.mubr.bf16.mxu0 %v354
    %736 = vmatmul.mubr.bf16.gmra.mrb[0].mxu0 %v353
    %v737 = vpop.f32.mrb[0].mxu0
    %v738 = vadd.f32 %v117, %v737
    %v739 = vpop.f32.mrb[0].mxu0
    %v740 = vpop.f32.mrb[0].mxu0
    %v741 = vadd.f32 %v117, %v740
    %v742 = vpop.f32.mrb[0].mxu0
    %743 = vmatprep.mubr.bf16.mxu0 %v356
    %744 = vmatmul.mubr.bf16.gmra.mrb[0].mxu0 %v355
    %v745 = vpop.f32.mrb[0].mxu0
    %v746 = vadd.f32 %v117, %v745
    %v747 = vpop.f32.mrb[0].mxu0
    %v748 = vpop.f32.mrb[0].mxu0
    %v749 = vadd.f32 %v117, %v748
    %v750 = vpop.f32.mrb[0].mxu0
    %751 = vmatprep.mubr.bf16.mxu0 %v358
    %752 = vmatmul.mubr.bf16.gmra.mrb[0].mxu0 %v357
    %v753 = vpop.f32.mrb[0].mxu0
    %v754 = vadd.f32 %v117, %v753
    %v755 = vpop.f32.mrb[0].mxu0
    %v756 = vpop.f32.mrb[0].mxu0
    %v757 = vadd.f32 %v117, %v756
    %v758 = vpop.f32.mrb[0].mxu0
    %759 = vmatprep.mubr.bf16.mxu0 %v360
    %760 = vmatmul.mubr.bf16.gmra.mrb[0].mxu0 %v359
    %v761 = vpop.f32.mrb[0].mxu0
    %v762 = vadd.f32 %v117, %v761
    %v763 = vpop.f32.mrb[0].mxu0
    %v764 = vpop.f32.mrb[0].mxu0
    %v765 = vadd.f32 %v117, %v764
    %v766 = vpop.f32.mrb[0].mxu0
    %767 = vmatprep.mubr.bf16.mxu0 %v362
    %768 = vmatmul.mubr.bf16.gmra.mrb[0].mxu0 %v361
    %v769 = vpop.f32.mrb[0].mxu0
    %v770 = vadd.f32 %v117, %v769
    %v771 = vpop.f32.mrb[0].mxu0
    %v772 = vpop.f32.mrb[0].mxu0
    %v773 = vadd.f32 %v117, %v772
    %v774 = vpop.f32.mrb[0].mxu0
    %775 = vmatprep.mubr.bf16.mxu0 %v364
    %776 = vmatmul.mubr.bf16.gmra.mrb[0].mxu0 %v363
    %v777 = vpop.f32.mrb[0].mxu0
    %v778 = vadd.f32 %v117, %v777
    %v779 = vpop.f32.mrb[0].mxu0
    %v780 = vpop.f32.mrb[0].mxu0
    %v781 = vadd.f32 %v117, %v780
    %v782 = vpop.f32.mrb[0].mxu0
    %783 = vmatprep.mubr.bf16.mxu0 %v366
    %784 = vmatmul.mubr.bf16.gmra.mrb[0].mxu0 %v365
    %v785 = vpop.f32.mrb[0].mxu0
    %v786 = vadd.f32 %v117, %v785
    %v787 = vpop.f32.mrb[0].mxu0
    %v788 = vpop.f32.mrb[0].mxu0
    %v789 = vadd.f32 %v117, %v788
    %v790 = vpop.f32.mrb[0].mxu0
    %791 = vmatprep.mubr.bf16.mxu0 %v368
    %792 = vmatmul.mubr.bf16.gmra.mrb[0].mxu0 %v367
    %v793 = vpop.f32.mrb[0].mxu0
    %v794 = vadd.f32 %v117, %v793
    %v795 = vpop.f32.mrb[0].mxu0
    %v796 = vpop.f32.mrb[0].mxu0
    %v797 = vadd.f32 %v117, %v796
    %v798 = vpop.f32.mrb[0].mxu0
    %799 = vmatprep.mubr.bf16.mxu0 %v370
    %800 = vmatmul.mubr.bf16.gmra.mrb[0].mxu0 %v369
    %v801 = vpop.f32.mrb[0].mxu0
    %v802 = vadd.f32 %v117, %v801
    %v803 = vpop.f32.mrb[0].mxu0
    %v804 = vpop.f32.mrb[0].mxu0
    %v805 = vadd.f32 %v117, %v804
    %v806 = vpop.f32.mrb[0].mxu0
    %807 = vmatprep.mubr.bf16.mxu0 %v372
    %808 = vmatmul.mubr.bf16.gmra.mrb[0].mxu0 %v371
    %v809 = vpop.f32.mrb[0].mxu0
    %v810 = vadd.f32 %v117, %v809
    %v811 = vpop.f32.mrb[0].mxu0
    %v812 = vpop.f32.mrb[0].mxu0
    %v813 = vadd.f32 %v117, %v812
    %v814 = vpop.f32.mrb[0].mxu0
    %815 = vmatprep.mubr.bf16.mxu0 %v374
    %816 = vmatmul.mubr.bf16.gmra.mrb[0].mxu0 %v373
    %v817 = vpop.f32.mrb[0].mxu0
    %v818 = vadd.f32 %v117, %v817
    %v819 = vpop.f32.mrb[0].mxu0
    %v820 = vpop.f32.mrb[0].mxu0
    %v821 = vadd.f32 %v117, %v820
    %v822 = vpop.f32.mrb[0].mxu0
    %823 = vdwg.mxu0
    %v824 = vmax.f32 %v570, 0.0
    %v825 = vmax.f32 %v573, 0.0
    %v826 = vmax.f32 %v578, 0.0
    %v827 = vmax.f32 %v581, 0.0
    %v828 = vmax.f32 %v586, 0.0
    %v829 = vmax.f32 %v589, 0.0
    %v830 = vmax.f32 %v594, 0.0
    %v831 = vmax.f32 %v597, 0.0
    %v832 = vmax.f32 %v602, 0.0
    %v833 = vmax.f32 %v605, 0.0
    %v834 = vmax.f32 %v610, 0.0
    %v835 = vmax.f32 %v613, 0.0
    %v836 = vmax.f32 %v618, 0.0
    %v837 = vmax.f32 %v621, 0.0
    %v838 = vmax.f32 %v626, 0.0
    %v839 = vmax.f32 %v629, 0.0
    %v840 = vmax.f32 %v634, 0.0
    %v841 = vmax.f32 %v637, 0.0
    %v842 = vmax.f32 %v642, 0.0
    %v843 = vmax.f32 %v645, 0.0
    %v844 = vmax.f32 %v650, 0.0
    %v845 = vmax.f32 %v653, 0.0
    %v846 = vmax.f32 %v658, 0.0
    %v847 = vmax.f32 %v661, 0.0
    %v848 = vmax.f32 %v666, 0.0
    %v849 = vmax.f32 %v669, 0.0
    %v850 = vmax.f32 %v674, 0.0
    %v851 = vmax.f32 %v677, 0.0
    %v852 = vmax.f32 %v682, 0.0
    %v853 = vmax.f32 %v685, 0.0
    %v854 = vmax.f32 %v690, 0.0
    %v855 = vmax.f32 %v693, 0.0
    %v856 = vmax.f32 %v698, 0.0
    %v857 = vmax.f32 %v701, 0.0
    %v858 = vmax.f32 %v706, 0.0
    %v859 = vmax.f32 %v709, 0.0
    %v860 = vmax.f32 %v714, 0.0
    %v861 = vmax.f32 %v717, 0.0
    %v862 = vmax.f32 %v722, 0.0
    %v863 = vmax.f32 %v725, 0.0
    %v864 = vmax.f32 %v730, 0.0
    %v865 = vmax.f32 %v733, 0.0
    %v866 = vmax.f32 %v738, 0.0
    %v867 = vmax.f32 %v741, 0.0
    %v868 = vmax.f32 %v746, 0.0
    %v869 = vmax.f32 %v749, 0.0
    %v870 = vmax.f32 %v754, 0.0
    %v871 = vmax.f32 %v757, 0.0
    %v872 = vmax.f32 %v762, 0.0
    %v873 = vmax.f32 %v765, 0.0
    %v874 = vmax.f32 %v770, 0.0
    %v875 = vmax.f32 %v773, 0.0
    %v876 = vmax.f32 %v778, 0.0
    %v877 = vmax.f32 %v781, 0.0
    %v878 = vmax.f32 %v786, 0.0
    %v879 = vmax.f32 %v789, 0.0
    %v880 = vmax.f32 %v794, 0.0
    %v881 = vmax.f32 %v797, 0.0
    %v882 = vmax.f32 %v802, 0.0
    %v883 = vmax.f32 %v805, 0.0
    %v884 = vmax.f32 %v810, 0.0
    %v885 = vmax.f32 %v813, 0.0
    %v886 = vmax.f32 %v818, 0.0
    %v887 = vmax.f32 %v821, 0.0
    %v888 = vpack.c.bf16 %v825, %v824
    %v889 = vpack.c.bf16 %v827, %v826
    %v890 = vpack.c.bf16 %v829, %v828
    %v891 = vpack.c.bf16 %v831, %v830
    %v892 = vpack.c.bf16 %v833, %v832
    %v893 = vpack.c.bf16 %v835, %v834
    %v894 = vpack.c.bf16 %v837, %v836
    %v895 = vpack.c.bf16 %v839, %v838
    %v896 = vpack.c.bf16 %v841, %v840
    %v897 = vpack.c.bf16 %v843, %v842
    %v898 = vpack.c.bf16 %v845, %v844
    %v899 = vpack.c.bf16 %v847, %v846
    %v900 = vpack.c.bf16 %v849, %v848
    %v901 = vpack.c.bf16 %v851, %v850
    %v902 = vpack.c.bf16 %v853, %v852
    %v903 = vpack.c.bf16 %v855, %v854
    %v904 = vpack.c.bf16 %v857, %v856
    %v905 = vpack.c.bf16 %v859, %v858
    %v906 = vpack.c.bf16 %v861, %v860
    %v907 = vpack.c.bf16 %v863, %v862
    %v908 = vpack.c.bf16 %v865, %v864
    %v909 = vpack.c.bf16 %v867, %v866
    %v910 = vpack.c.bf16 %v869, %v868
    %v911 = vpack.c.bf16 %v871, %v870
    %v912 = vpack.c.bf16 %v873, %v872
    %v913 = vpack.c.bf16 %v875, %v874
    %v914 = vpack.c.bf16 %v877, %v876
    %v915 = vpack.c.bf16 %v879, %v878
    %v916 = vpack.c.bf16 %v881, %v880
    %v917 = vpack.c.bf16 %v883, %v882
    %v918 = vpack.c.bf16 %v885, %v884
    %v919 = vpack.c.bf16 %v887, %v886
    %v952 = vunpack.c.l.b16 %v888
    %v953 = vunpack.c.h.b16 %v888
    %v954 = vunpack.c.l.b16 %v889
    %v955 = vunpack.c.h.b16 %v889
    %v956 = vunpack.c.l.b16 %v890
    %v957 = vunpack.c.h.b16 %v890
    %v958 = vunpack.c.l.b16 %v891
    %v959 = vunpack.c.h.b16 %v891
    %v960 = vunpack.c.l.b16 %v892
    %v961 = vunpack.c.h.b16 %v892
    %v962 = vunpack.c.l.b16 %v893
    %v963 = vunpack.c.h.b16 %v893
    %v964 = vunpack.c.l.b16 %v894
    %v965 = vunpack.c.h.b16 %v894
    %v966 = vunpack.c.l.b16 %v895
    %v967 = vunpack.c.h.b16 %v895
    %v968 = vunpack.c.l.b16 %v896
    %v969 = vunpack.c.h.b16 %v896
    %v970 = vunpack.c.l.b16 %v897
    %v971 = vunpack.c.h.b16 %v897
    %v972 = vunpack.c.l.b16 %v898
    %v973 = vunpack.c.h.b16 %v898
    %v974 = vunpack.c.l.b16 %v899
    %v975 = vunpack.c.h.b16 %v899
    %v976 = vunpack.c.l.b16 %v900
    %v977 = vunpack.c.h.b16 %v900
    %v978 = vunpack.c.l.b16 %v901
    %v979 = vunpack.c.h.b16 %v901
    %v980 = vunpack.c.l.b16 %v902
    %v981 = vunpack.c.h.b16 %v902
    %v982 = vunpack.c.l.b16 %v903
    %v983 = vunpack.c.h.b16 %v903
    %v984 = vunpack.c.l.b16 %v904
    %v985 = vunpack.c.h.b16 %v904
    %v986 = vunpack.c.l.b16 %v905
    %v987 = vunpack.c.h.b16 %v905
    %v988 = vunpack.c.l.b16 %v906
    %v989 = vunpack.c.h.b16 %v906
    %v990 = vunpack.c.l.b16 %v907
    %v991 = vunpack.c.h.b16 %v907
    %v992 = vunpack.c.l.b16 %v908
    %v993 = vunpack.c.h.b16 %v908
    %v994 = vunpack.c.l.b16 %v909
    %v995 = vunpack.c.h.b16 %v909
    %v996 = vunpack.c.l.b16 %v910
    %v997 = vunpack.c.h.b16 %v910
    %v998 = vunpack.c.l.b16 %v911
    %v999 = vunpack.c.h.b16 %v911
    %v1000 = vunpack.c.l.b16 %v912
    %v1001 = vunpack.c.h.b16 %v912
    %v1002 = vunpack.c.l.b16 %v913
    %v1003 = vunpack.c.h.b16 %v913
    %v1004 = vunpack.c.l.b16 %v914
    %v1005 = vunpack.c.h.b16 %v914
    %v1006 = vunpack.c.l.b16 %v915
    %v1007 = vunpack.c.h.b16 %v915
    %v1008 = vunpack.c.l.b16 %v916
    %v1009 = vunpack.c.h.b16 %v916
    %v1010 = vunpack.c.l.b16 %v917
    %v1011 = vunpack.c.h.b16 %v917
    %v1012 = vunpack.c.l.b16 %v918
    %v1013 = vunpack.c.h.b16 %v918
    %v1014 = vunpack.c.l.b16 %v919
    %v1015 = vunpack.c.h.b16 %v919
    %v1016 = vpack.c.b16 %v952, %v952
    %v1017 = vpack.c.b16 %v953, %v953
    %v1018 = vpack.c.b16 %v954, %v954
    %v1019 = vpack.c.b16 %v955, %v955
    %v1020 = vpack.c.b16 %v956, %v956
    %v1021 = vpack.c.b16 %v957, %v957
    %v1022 = vpack.c.b16 %v958, %v958
    %v1023 = vpack.c.b16 %v959, %v959
    %v1024 = vpack.c.b16 %v960, %v960
    %v1025 = vpack.c.b16 %v961, %v961
    %v1026 = vpack.c.b16 %v962, %v962
    %v1027 = vpack.c.b16 %v963, %v963
    %v1028 = vpack.c.b16 %v964, %v964
    %v1029 = vpack.c.b16 %v965, %v965
    %v1030 = vpack.c.b16 %v966, %v966
    %v1031 = vpack.c.b16 %v967, %v967
    %v1032 = vpack.c.b16 %v968, %v968
    %v1033 = vpack.c.b16 %v969, %v969
    %v1034 = vpack.c.b16 %v970, %v970
    %v1035 = vpack.c.b16 %v971, %v971
    %v1036 = vpack.c.b16 %v972, %v972
    %v1037 = vpack.c.b16 %v973, %v973
    %v1038 = vpack.c.b16 %v974, %v974
    %v1039 = vpack.c.b16 %v975, %v975
    %v1040 = vpack.c.b16 %v976, %v976
    %v1041 = vpack.c.b16 %v977, %v977
    %v1042 = vpack.c.b16 %v978, %v978
    %v1043 = vpack.c.b16 %v979, %v979
    %v1044 = vpack.c.b16 %v980, %v980
    %v1045 = vpack.c.b16 %v981, %v981
    %v1046 = vpack.c.b16 %v982, %v982
    %v1047 = vpack.c.b16 %v983, %v983
    %v1048 = vpack.c.b16 %v984, %v984
    %v1049 = vpack.c.b16 %v985, %v985
    %v1050 = vpack.c.b16 %v986, %v986
    %v1051 = vpack.c.b16 %v987, %v987
    %v1052 = vpack.c.b16 %v988, %v988
    %v1053 = vpack.c.b16 %v989, %v989
    %v1054 = vpack.c.b16 %v990, %v990
    %v1055 = vpack.c.b16 %v991, %v991
    %v1056 = vpack.c.b16 %v992, %v992
    %v1057 = vpack.c.b16 %v993, %v993
    %v1058 = vpack.c.b16 %v994, %v994
    %v1059 = vpack.c.b16 %v995, %v995
    %v1060 = vpack.c.b16 %v996, %v996
    %v1061 = vpack.c.b16 %v997, %v997
    %v1062 = vpack.c.b16 %v998, %v998
    %v1063 = vpack.c.b16 %v999, %v999
    %v1064 = vpack.c.b16 %v1000, %v1000
    %v1065 = vpack.c.b16 %v1001, %v1001
    %v1066 = vpack.c.b16 %v1002, %v1002
    %v1067 = vpack.c.b16 %v1003, %v1003
    %v1068 = vpack.c.b16 %v1004, %v1004
    %v1069 = vpack.c.b16 %v1005, %v1005
    %v1070 = vpack.c.b16 %v1006, %v1006
    %v1071 = vpack.c.b16 %v1007, %v1007
    %v1072 = vpack.c.b16 %v1008, %v1008
    %v1073 = vpack.c.b16 %v1009, %v1009
    %v1074 = vpack.c.b16 %v1010, %v1010
    %v1075 = vpack.c.b16 %v1011, %v1011
    %v1076 = vpack.c.b16 %v1012, %v1012
    %v1077 = vpack.c.b16 %v1013, %v1013
    %v1078 = vpack.c.b16 %v1014, %v1014
    %v1079 = vpack.c.b16 %v1015, %v1015
    %1144 = vst [vmem:[#allocation2] sm:$0xf] %v1016
    %1145 = vst [vmem:[#allocation2 + $0x4] sm:$0xf] %v1017
    %1146 = vst [vmem:[#allocation2 + $0x8] sm:$0xf] %v1018
    %1147 = vst [vmem:[#allocation2 + $0xc] sm:$0xf] %v1019
    %1148 = vst [vmem:[#allocation2 + $0x10] sm:$0xf] %v1020
    %1149 = vst [vmem:[#allocation2 + $0x14] sm:$0xf] %v1021
    %1150 = vst [vmem:[#allocation2 + $0x18] sm:$0xf] %v1022
    %1151 = vst [vmem:[#allocation2 + $0x1c] sm:$0xf] %v1023
    %1152 = vst [vmem:[#allocation2 + $0x20] sm:$0xf] %v1024
    %1153 = vst [vmem:[#allocation2 + $0x24] sm:$0xf] %v1025
    %1154 = vst [vmem:[#allocation2 + $0x28] sm:$0xf] %v1026
    %1155 = vst [vmem:[#allocation2 + $0x2c] sm:$0xf] %v1027
    %1156 = vst [vmem:[#allocation2 + $0x30] sm:$0xf] %v1028
    %1157 = vst [vmem:[#allocation2 + $0x34] sm:$0xf] %v1029
    %1158 = vst [vmem:[#allocation2 + $0x38] sm:$0xf] %v1030
    %1159 = vst [vmem:[#allocation2 + $0x3c] sm:$0xf] %v1031
    %1160 = vst [vmem:[#allocation2 + $0x40] sm:$0xf] %v1032
    %1161 = vst [vmem:[#allocation2 + $0x44] sm:$0xf] %v1033
    %1162 = vst [vmem:[#allocation2 + $0x48] sm:$0xf] %v1034
    %1163 = vst [vmem:[#allocation2 + $0x4c] sm:$0xf] %v1035
    %1164 = vst [vmem:[#allocation2 + $0x50] sm:$0xf] %v1036
    %1165 = vst [vmem:[#allocation2 + $0x54] sm:$0xf] %v1037
    %1166 = vst [vmem:[#allocation2 + $0x58] sm:$0xf] %v1038
    %1167 = vst [vmem:[#allocation2 + $0x5c] sm:$0xf] %v1039
    %1168 = vst [vmem:[#allocation2 + $0x60] sm:$0xf] %v1040
    %1169 = vst [vmem:[#allocation2 + $0x64] sm:$0xf] %v1041
    %1170 = vst [vmem:[#allocation2 + $0x68] sm:$0xf] %v1042
    %1171 = vst [vmem:[#allocation2 + $0x6c] sm:$0xf] %v1043
    %1172 = vst [vmem:[#allocation2 + $0x70] sm:$0xf] %v1044
    %1173 = vst [vmem:[#allocation2 + $0x74] sm:$0xf] %v1045
    %1174 = vst [vmem:[#allocation2 + $0x78] sm:$0xf] %v1046
    %1175 = vst [vmem:[#allocation2 + $0x7c] sm:$0xf] %v1047
    %1176 = vst [vmem:[#allocation2 + $0x80] sm:$0xf] %v1048
    %1177 = vst [vmem:[#allocation2 + $0x84] sm:$0xf] %v1049
    %1178 = vst [vmem:[#allocation2 + $0x88] sm:$0xf] %v1050
    %1179 = vst [vmem:[#allocation2 + $0x8c] sm:$0xf] %v1051
    %1180 = vst [vmem:[#allocation2 + $0x90] sm:$0xf] %v1052
    %1181 = vst [vmem:[#allocation2 + $0x94] sm:$0xf] %v1053
    %1182 = vst [vmem:[#allocation2 + $0x98] sm:$0xf] %v1054
    %1183 = vst [vmem:[#allocation2 + $0x9c] sm:$0xf] %v1055
    %1184 = vst [vmem:[#allocation2 + $0xa0] sm:$0xf] %v1056
    %1185 = vst [vmem:[#allocation2 + $0xa4] sm:$0xf] %v1057
    %1186 = vst [vmem:[#allocation2 + $0xa8] sm:$0xf] %v1058
    %1187 = vst [vmem:[#allocation2 + $0xac] sm:$0xf] %v1059
    %1188 = vst [vmem:[#allocation2 + $0xb0] sm:$0xf] %v1060
    %1189 = vst [vmem:[#allocation2 + $0xb4] sm:$0xf] %v1061
    %1190 = vst [vmem:[#allocation2 + $0xb8] sm:$0xf] %v1062
    %1191 = vst [vmem:[#allocation2 + $0xbc] sm:$0xf] %v1063
    %1192 = vst [vmem:[#allocation2 + $0xc0] sm:$0xf] %v1064
    %1193 = vst [vmem:[#allocation2 + $0xc4] sm:$0xf] %v1065
    %1194 = vst [vmem:[#allocation2 + $0xc8] sm:$0xf] %v1066
    %1195 = vst [vmem:[#allocation2 + $0xcc] sm:$0xf] %v1067
    %1196 = vst [vmem:[#allocation2 + $0xd0] sm:$0xf] %v1068
    %1197 = vst [vmem:[#allocation2 + $0xd4] sm:$0xf] %v1069
    %1198 = vst [vmem:[#allocation2 + $0xd8] sm:$0xf] %v1070
    %1199 = vst [vmem:[#allocation2 + $0xdc] sm:$0xf] %v1071
    %1200 = vst [vmem:[#allocation2 + $0xe0] sm:$0xf] %v1072
    %1201 = vst [vmem:[#allocation2 + $0xe4] sm:$0xf] %v1073
    %1202 = vst [vmem:[#allocation2 + $0xe8] sm:$0xf] %v1074
    %1203 = vst [vmem:[#allocation2 + $0xec] sm:$0xf] %v1075
    %1204 = vst [vmem:[#allocation2 + $0xf0] sm:$0xf] %v1076
    %1205 = vst [vmem:[#allocation2 + $0xf4] sm:$0xf] %v1077
    %1206 = vst [vmem:[#allocation2 + $0xf8] sm:$0xf] %v1078
    %1207 = vst [vmem:[#allocation2 + $0xfc] sm:$0xf] %v1079
    // Predicated region
    $region14: #{conv_bn_act.1} parent=1 // pred_check
      _
    $region15: #{conv_bn_act.1} parent=1 // pred_check_branch
      %1209 = sbr.rel (0) target = $region17
    $region16: #{conv_bn_act.1} parent=1 // pred_region
      %s1211 = ssub.s32 4096, 4096
      %1212 = vsyncadd [#allocation3], %s1211
      %s1213 = sshll.u32 [#allocation2], 4
      %s1214 = int_to_ptr.vmem [resolvable:$true] %s1213
      %1219 = dma.vmem_to_hbm [thread:$0]  %s1214, 4096, %s3, [#allocation3], 64, 64, 4
    $region17: #{conv_bn_act.1} parent=1 // pred_fallthru
      _
    // Predicated region
    $region18: #{conv_bn_act.1} parent=1 // pred_check
      _
    $region19: #{conv_bn_act.1} parent=1 // pred_check_branch
      %1221 = sbr.rel (0) target = $region21
    $region20: #{conv_bn_act.1} parent=1 // pred_region
      %1222 = dma.done [#allocation3], 4096
    $region21: #{conv_bn_act.1} parent=1 // pred_fallthru
      _
    %1223 = vsyncpa [#allocation3], 1

</llo_original>
